<compile_context>
chip_gen: v7x
topology: tpu7x:2x2x1
jax: 0.10.0
libtpu: 0.0.40
codegen_flags: <defaults>
</compile_context>

<pallas_src>
import functools

import jax
import jax.numpy as jnp
from jax.experimental import pallas as pl
from jax.experimental.pallas import tpu as pltpu


def _robust_sum_kernel(a_ref, v_ref, vt_ref, v2_ref, o_ref, *, L, norm, epsilon,
                       gamma, t, delta, approx_reciprocal):
    """One (batch, row-tile) grid step: full L-iteration robust aggregation for
    a (tm, S) slab of A against the whole (S, Dp) V.

    a_ref : (1, tm, S)   A row slab        (f32 or bf16)
    v_ref : (1, S, Dp)   values            (f32 or bf16)
    vt_ref: (1, Dp, S)   pre-transposed V  (f32 or bf16)
    v2_ref: (1, 1, S)    ||V_j||^2 per batch, precomputed in the wrapper (f32)
    o_ref : (1, tm, Dp)  output (f32)
    """
    A = a_ref[0]
    V = v_ref[0]
    Vt = vt_ref[0]
    v2 = v2_ref[0].astype(jnp.float32)                         # (1, S)
    mxu_dtype = V.dtype                                        # bf16 fast mode, else f32
    A_f32 = A.astype(jnp.float32)

    def recip(x):
        return pl.reciprocal(x, approx=True) if approx_reciprocal else 1.0 / x

    # M = A @ V on the MXU, f32 accumulation.
    M = jnp.dot(A, V, preferred_element_type=jnp.float32)      # (tm, Dp)

    # L is small and static (3 here) -> Python unroll is fine.
    # TODO(synk): switch to lax.fori_loop if L ever becomes large/configurable.
    for _ in range(L):
        # torch.cdist(M, V) with p=2 via the Gram expansion:
        #   dist[i,j]^2 = |M_i|^2 + |V_j|^2 - 2 <M_i, V_j>
        m2 = jnp.sum(M * M, axis=-1, keepdims=True)            # (tm, 1)
        cross = jnp.dot(M.astype(mxu_dtype), Vt,
                        preferred_element_type=jnp.float32)    # (tm, S)
        dist = jnp.sqrt(jnp.maximum(m2 + v2 - 2.0 * cross, 0.0))

        if norm in ("L2", "L1"):
            w = recip(dist + epsilon)
        elif norm == "MCP":
            w = recip(dist + epsilon) - 1.0 / gamma
            w = jnp.maximum(w, jnp.float32(epsilon))           # w[w < eps] = eps
        elif norm == "Huber":
            w = delta * recip(dist + epsilon)
            w = jnp.minimum(w, jnp.float32(1.0))               # w[w > 1] = 1
        else:
            raise ValueError(f"unknown norm {norm}")

        ww = w * A_f32                                         # (tm, S)
        # F.normalize(ww, p=1, dim=-1) folded into a per-row scale applied
        # AFTER the matmul: (ww / denom) @ V == (ww @ V) * (1 / denom).
        denom = jnp.maximum(jnp.sum(jnp.abs(ww), axis=-1, keepdims=True), 1e-12)
        unnorm = jnp.dot(ww.astype(mxu_dtype), V,
                         preferred_element_type=jnp.float32)   # (tm, Dp)
        upd = unnorm * recip(denom)

        if t == 1.0:     # static specialization: skip the dead (1-t)*M term
            M = upd
        else:
            M = (1.0 - t) * M + t * upd

    o_ref[0] = M.astype(o_ref.dtype)


def _vmem_capacity_bytes():
    """Physical VMEM per TensorCore; generation-aware, with a conservative
    (v7x-floor) fallback if the query is unavailable."""
    try:
        cap = getattr(pltpu.get_tpu_info(), "vmem_capacity_bytes", None)
        if cap:
            return int(cap)
    except Exception:
        pass
    return 64 * 1024 * 1024


def _step_vmem_bytes(tm, s_pad, d_pad, in_bytes, v_buffers):
    """Per-grid-step VMEM working set estimate (bytes), f32-conservative temps."""
    return (2 * tm * s_pad * in_bytes                     # double-buffered A slab
            + 2 * v_buffers * s_pad * d_pad * in_bytes    # V and V.T blocks
            + 4 * tm * s_pad * 4                          # loop temps cross/dist/w/ww
            + 6 * tm * d_pad * 4                          # M/unnorm + dbl-buffered out
            + 2 * s_pad * 4)                              # v2 row


def _choose_row_tile(s_pad, d_pad, in_bytes, v_buffers, budget_bytes):
    """Largest row tile tm (dividing s_pad, multiple of 8) whose working set
    fits the budget; prefer multiples of 256 (v6e/v7x 2x256^2 MXU), then 128
    (v5e 4x128^2), then the largest fitting multiple of 8."""
    divisors = [d for d in range(8, s_pad + 1, 8) if s_pad % d == 0]
    fitting = [d for d in divisors
               if _step_vmem_bytes(d, s_pad, d_pad, in_bytes, v_buffers) <= budget_bytes]
    if not fitting:
        # TODO(synk): for very large S the full (S, Dp) V no longer fits next to
        # a useful A slab; chunk the S/V-row axis with an in-kernel
        # pltpu.emit_pipeline accumulating unnorm/denom instead of shrinking tm.
        return divisors[0]
    for gran in (256, 128):
        cand = [d for d in fitting if d % gran == 0]
        if cand:
            return max(cand)
    return max(fitting)


def robust_sum(A, V, *, L=3, norm="L2", epsilon=0.01, gamma=4.0, t=1.0, delta=4.0,
               approx_reciprocal=False, use_bf16=False):
    """A: (B, S, S), V: (B, S, D) -> (B, S, D), matching RobustSum.forward.

    approx_reciprocal / use_bf16 are opt-in fast paths (EUP reciprocals /
    bf16 MXU inputs with f32 accumulation) that deviate slightly from the
    f32 PyTorch reference.
    """
    B, S, S2 = A.shape
    assert S == S2, "A must be (B, S, S)"
    Bv, Sv, D = V.shape
    assert Bv == B and Sv == S, "V must be (B, S, D)"

    # Exact zero-padding:
    #  * D -> d_pad (multiple of 128): lane-dense stores, full MXU lanes.
    #    (If the real workload has D << 128 this still leaves 1 - D/128 of the
    #     MXU lanes / V traffic unused; concatenate feature groups that share A
    #     along D on the caller side if possible.)
    #  * S -> s_pad (multiple of 8): zero A rows/cols + zero V rows are exact
    #    (padded columns give ww == 0; padded rows stay 0 via the denom clamp)
    #    and keep the row tile a legal multiple-of-8 sublane block.
    d_pad = -(-D // 128) * 128
    s_pad = -(-S // 8) * 8

    A_f = A.astype(jnp.float32)
    V_f = V.astype(jnp.float32)
    if s_pad != S:
        A_f = jnp.pad(A_f, ((0, 0), (0, s_pad - S), (0, s_pad - S)))
        V_f = jnp.pad(V_f, ((0, 0), (0, s_pad - S), (0, 0)))
    if d_pad != D:
        V_f = jnp.pad(V_f, ((0, 0), (0, 0), (0, d_pad - D)))

    # ||V_j||^2 hoisted out of the kernel entirely (once per batch, in f32).
    v2 = jnp.sum(V_f * V_f, axis=-1)[:, None, :]               # (B, 1, s_pad)

    in_dtype = jnp.bfloat16 if use_bf16 else jnp.float32
    in_bytes = jnp.dtype(in_dtype).itemsize
    A_in = A_f.astype(in_dtype)
    V_in = V_f.astype(in_dtype)
    Vt_in = jnp.swapaxes(V_in, 1, 2)                           # (B, d_pad, s_pad)

    # Generation-aware tiling: target ~65% of physical VMEM for the per-step
    # working set (v5e/v6e: ~83 of 128 MiB; v7x: ~41 of 64 MiB).
    capacity = _vmem_capacity_bytes()
    budget = int(0.65 * capacity)

    # Single-buffer the big loop-invariant V / V.T blocks when they are large:
    # their block index only changes at batch boundaries, so double buffering
    # them only burns VMEM (matters most on v7x's 64 MiB).
    v_block_bytes = s_pad * d_pad * in_bytes
    single_buffer_v = v_block_bytes > capacity // 16
    v_buffers = 1 if single_buffer_v else 2
    v_kwargs = {"pipeline_mode": pl.Buffered(1)} if single_buffer_v else {}

    tm = _choose_row_tile(s_pad, d_pad, in_bytes, v_buffers, budget)
    n_row_tiles = s_pad // tm

    vmem_est = _step_vmem_bytes(tm, s_pad, d_pad, in_bytes, v_buffers)
    vmem_limit = int(min(max(2 * vmem_est, 32 * 1024 * 1024), int(0.9 * capacity)))

    kernel = functools.partial(
        _robust_sum_kernel,
        L=L, norm=norm, epsilon=float(epsilon), gamma=float(gamma), t=float(t),
        delta=float(delta), approx_reciprocal=approx_reciprocal,
    )

    out = pl.pallas_call(
        kernel,
        out_shape=jax.ShapeDtypeStruct((B, s_pad, d_pad), jnp.float32),
        grid_spec=pltpu.PrefetchScalarGridSpec(
            num_scalar_prefetch=0,
            grid=(B, n_row_tiles),
            in_specs=[
                # A: one (tm, S) row slab per grid step.
                pl.BlockSpec((1, tm, s_pad), lambda b, i: (b, i, 0)),
                # V / V.T / ||V||^2: whole per-batch blocks, re-fetched only
                # when the batch index changes.
                pl.BlockSpec((1, s_pad, d_pad), lambda b, i: (b, 0, 0), **v_kwargs),
                pl.BlockSpec((1, d_pad, s_pad), lambda b, i: (b, 0, 0), **v_kwargs),
                pl.BlockSpec((1, 1, s_pad), lambda b, i: (b, 0, 0)),
            ],
            out_specs=pl.BlockSpec((1, tm, d_pad), lambda b, i: (b, i, 0)),
        ),
        compiler_params=pltpu.CompilerParams(
            # Every (batch, row-tile) step is independent: both axes parallel
            # (lets v7x shard contiguous row-tile ranges across its 2 TCs).
            dimension_semantics=("parallel", "parallel"),
            vmem_limit_bytes=vmem_limit,
        ),
    )(A_in, V_in, Vt_in, v2)

    if s_pad != S or d_pad != D:
        out = out[:, :S, :D]
    return out


def _robust_sum_ref(A, V, *, L=3, norm="L2", epsilon=0.01, gamma=4.0, t=1.0, delta=4.0):
    # Pure-JAX reference mirroring the PyTorch forward (pairwise-diff cdist).
    M = jnp.einsum("bij,bjd->bid", A, V)
    for _ in range(L):
        diff = M[:, :, None, :] - V[:, None, :, :]
        dist = jnp.sqrt(jnp.maximum(jnp.sum(diff * diff, axis=-1), 0.0))
        if norm in ("L2", "L1"):
            w = 1.0 / (dist + epsilon)
        elif norm == "MCP":
            w = 1.0 / (dist + epsilon) - 1.0 / gamma
            w = jnp.where(w < epsilon, epsilon, w)
        elif norm == "Huber":
            w = delta / (dist + epsilon)
            w = jnp.where(w > 1.0, 1.0, w)
        ww = w * A
        denom = jnp.maximum(jnp.sum(jnp.abs(ww), axis=-1, keepdims=True), 1e-12)
        ww_norm = ww / denom
        M = (1.0 - t) * M + t * jnp.einsum("bij,bjd->bid", ww_norm, V)
    return M


if __name__ == "__main__":
    B, S, D = 2, 8, 32  # batch, seq_len, d_model
    key = jax.random.PRNGKey(0)
    ka, kv = jax.random.split(key)
    # A like a row-stochastic attention matrix, V like values.
    A = jax.nn.softmax(jax.random.normal(ka, (B, S, S), dtype=jnp.float32), axis=-1)
    V = jax.random.normal(kv, (B, S, D), dtype=jnp.float32)

    out = jax.block_until_ready(robust_sum(A, V, L=3, norm="L2", epsilon=0.01, t=1.0))
    ref = _robust_sum_ref(A, V, L=3, norm="L2", epsilon=0.01, t=1.0)
    assert out.shape == (B, S, D)
    assert jnp.allclose(out, ref, atol=1e-4, rtol=1e-4), "mismatch vs reference (L2)"

    # Other weighting branches and the t != 1 blend.
    for nm in ("MCP", "Huber"):
        o = jax.block_until_ready(robust_sum(A, V, L=2, norm=nm))
        r = _robust_sum_ref(A, V, L=2, norm=nm)
        assert jnp.allclose(o, r, atol=1e-4, rtol=1e-4), f"mismatch vs reference ({nm})"
    o = jax.block_until_ready(robust_sum(A, V, L=2, norm="L2", t=0.5))
    r = _robust_sum_ref(A, V, L=2, norm="L2", t=0.5)
    assert jnp.allclose(o, r, atol=1e-4, rtol=1e-4), "mismatch vs reference (t=0.5)"

    # Opt-in fast path (bf16 MXU inputs + EUP reciprocals) -- deliberate,
    # small deviation from the f32 reference.
    fast = jax.block_until_ready(
        robust_sum(A, V, L=3, norm="L2", use_bf16=True, approx_reciprocal=True))
    assert fast.shape == (B, S, D)
    assert bool(jnp.isfinite(fast).all())
    assert jnp.allclose(fast, ref, atol=2e-1, rtol=2e-1), "fast path diverged"

    # Non-multiple-of-8 S and odd D: exercises the exact S/D padding route.
    S2_, D2_ = 7, 20
    A2 = jax.nn.softmax(jax.random.normal(ka, (B, S2_, S2_), dtype=jnp.float32), axis=-1)
    V2 = jax.random.normal(kv, (B, S2_, D2_), dtype=jnp.float32)
    o2 = jax.block_until_ready(robust_sum(A2, V2, L=2, norm="L2"))
    r2 = _robust_sum_ref(A2, V2, L=2, norm="L2")
    assert o2.shape == (B, S2_, D2_)
    assert jnp.allclose(o2, r2, atol=1e-4, rtol=1e-4), "mismatch vs reference (padded S)"

    print("KERNEL_OK")
</pallas_src>

<mosaic_0001>
module attributes {stable_mosaic.version = 11 : i64} {
  func.func @_robust_sum_kernel(%arg0: i32, %arg1: i32, %arg2: memref<1x8x8xf32, #tpu.memory_space<vmem>>, %arg3: memref<1x8x128xf32, #tpu.memory_space<vmem>>, %arg4: memref<1x128x8xf32, #tpu.memory_space<vmem>>, %arg5: memref<1x1x8xf32, #tpu.memory_space<vmem>>, %arg6: memref<1x8x128xf32, #tpu.memory_space<vmem>>) attributes {dimension_semantics = [#tpu.dimension_semantics<parallel>, #tpu.dimension_semantics<parallel>], iteration_bounds = array<i64: 2, 1>, scalar_prefetch = 0 : i64, scratch_operands = 0 : i64, tpu.core_type = #tpu.core_type<tc>, window_params = [{transform_indices = @transform_0, window_bounds = array<i64: 1, 8, 8>}, {transform_indices = @transform_1, window_bounds = array<i64: 1, 8, 128>}, {transform_indices = @transform_2, window_bounds = array<i64: 1, 128, 8>}, {transform_indices = @transform_3, window_bounds = array<i64: 1, 1, 8>}, {transform_indices = @transform_4, window_bounds = array<i64: 1, 8, 128>}]} {
    %c0 = arith.constant 0 : index
    %c0_0 = arith.constant 0 : index
    %c0_1 = arith.constant 0 : index
    %0 = vector.load %arg2[%c0, %c0_0, %c0_1] : memref<1x8x8xf32, #tpu.memory_space<vmem>>, vector<1x8x8xf32>
    %1 = vector.shape_cast %0 : vector<1x8x8xf32> to vector<8x8xf32>
    %c0_2 = arith.constant 0 : index
    %c0_3 = arith.constant 0 : index
    %c0_4 = arith.constant 0 : index
    %2 = vector.load %arg3[%c0_2, %c0_3, %c0_4] : memref<1x8x128xf32, #tpu.memory_space<vmem>>, vector<1x8x128xf32>
    %3 = vector.shape_cast %2 : vector<1x8x128xf32> to vector<8x128xf32>
    %c0_5 = arith.constant 0 : index
    %c0_6 = arith.constant 0 : index
    %c0_7 = arith.constant 0 : index
    %4 = vector.load %arg4[%c0_5, %c0_6, %c0_7] : memref<1x128x8xf32, #tpu.memory_space<vmem>>, vector<1x128x8xf32>
    %5 = vector.shape_cast %4 : vector<1x128x8xf32> to vector<128x8xf32>
    %c0_8 = arith.constant 0 : index
    %c0_9 = arith.constant 0 : index
    %c0_10 = arith.constant 0 : index
    %6 = vector.load %arg5[%c0_8, %c0_9, %c0_10] : memref<1x1x8xf32, #tpu.memory_space<vmem>>, vector<1x1x8xf32>
    %7 = vector.shape_cast %6 : vector<1x1x8xf32> to vector<1x8xf32>
    %cst = arith.constant dense<0.000000e+00> : vector<8x128xf32>
    %8 = tpu.matmul %1, %3, %cst {dimension_numbers = #tpu.dot_dimension_numbers<[1], [0], [0], [1], [0, 0, 1, 1], [], []>} : vector<8x8xf32>, vector<8x128xf32>, vector<8x128xf32> -> vector<8x128xf32>
    %9 = arith.mulf %8, %8 : vector<8x128xf32>
    %cst_11 = arith.constant dense<0.000000e+00> : vector<8xf32>
    %10 = vector.multi_reduction <add>, %9, %cst_11 [1] : vector<8x128xf32> to vector<8xf32>
    %11 = vector.shape_cast %10 : vector<8xf32> to vector<8x1xf32>
    %cst_12 = arith.constant dense<0.000000e+00> : vector<8x8xf32>
    %12 = tpu.matmul %8, %5, %cst_12 {dimension_numbers = #tpu.dot_dimension_numbers<[1], [0], [0], [1], [0, 0, 1, 1], [], []>} : vector<8x128xf32>, vector<128x8xf32>, vector<8x8xf32> -> vector<8x8xf32>
    %13 = vector.broadcast %11 : vector<8x1xf32> to vector<8x8xf32>
    %14 = vector.broadcast %7 : vector<1x8xf32> to vector<8x8xf32>
    %15 = arith.addf %13, %14 : vector<8x8xf32>
    %cst_13 = arith.constant 2.000000e+00 : f32
    %16 = vector.broadcast %cst_13 : f32 to vector<8x8xf32>
    %17 = arith.mulf %16, %12 : vector<8x8xf32>
    %18 = arith.subf %15, %17 : vector<8x8xf32>
    %cst_14 = arith.constant 0.000000e+00 : f32
    %19 = vector.broadcast %cst_14 : f32 to vector<8x8xf32>
    %20 = arith.maximumf %18, %19 : vector<8x8xf32>
    %21 = math.sqrt %20 : vector<8x8xf32>
    %cst_15 = arith.constant 0.00999999977 : f32
    %22 = vector.broadcast %cst_15 : f32 to vector<8x8xf32>
    %23 = arith.addf %21, %22 : vector<8x8xf32>
    %cst_16 = arith.constant 1.000000e+00 : f32
    %24 = vector.broadcast %cst_16 : f32 to vector<8x8xf32>
    %25 = arith.divf %24, %23 : vector<8x8xf32>
    %26 = arith.mulf %25, %1 : vector<8x8xf32>
    %27 = math.absf %26 : vector<8x8xf32>
    %cst_17 = arith.constant dense<0.000000e+00> : vector<8xf32>
    %28 = vector.multi_reduction <add>, %27, %cst_17 [1] : vector<8x8xf32> to vector<8xf32>
    %29 = vector.shape_cast %28 : vector<8xf32> to vector<8x1xf32>
    %cst_18 = arith.constant 9.99999996E-13 : f32
    %30 = vector.broadcast %cst_18 : f32 to vector<8x1xf32>
    %31 = arith.maximumf %29, %30 : vector<8x1xf32>
    %cst_19 = arith.constant dense<0.000000e+00> : vector<8x128xf32>
    %32 = tpu.matmul %26, %3, %cst_19 {dimension_numbers = #tpu.dot_dimension_numbers<[1], [0], [0], [1], [0, 0, 1, 1], [], []>} : vector<8x8xf32>, vector<8x128xf32>, vector<8x128xf32> -> vector<8x128xf32>
    %cst_20 = arith.constant 1.000000e+00 : f32
    %33 = vector.broadcast %cst_20 : f32 to vector<8x1xf32>
    %34 = arith.divf %33, %31 : vector<8x1xf32>
    %35 = vector.broadcast %34 : vector<8x1xf32> to vector<8x128xf32>
    %36 = arith.mulf %32, %35 : vector<8x128xf32>
    %37 = arith.mulf %36, %36 : vector<8x128xf32>
    %cst_21 = arith.constant dense<0.000000e+00> : vector<8xf32>
    %38 = vector.multi_reduction <add>, %37, %cst_21 [1] : vector<8x128xf32> to vector<8xf32>
    %39 = vector.shape_cast %38 : vector<8xf32> to vector<8x1xf32>
    %cst_22 = arith.constant dense<0.000000e+00> : vector<8x8xf32>
    %40 = tpu.matmul %36, %5, %cst_22 {dimension_numbers = #tpu.dot_dimension_numbers<[1], [0], [0], [1], [0, 0, 1, 1], [], []>} : vector<8x128xf32>, vector<128x8xf32>, vector<8x8xf32> -> vector<8x8xf32>
    %41 = vector.broadcast %39 : vector<8x1xf32> to vector<8x8xf32>
    %42 = vector.broadcast %7 : vector<1x8xf32> to vector<8x8xf32>
    %43 = arith.addf %41, %42 : vector<8x8xf32>
    %cst_23 = arith.constant 2.000000e+00 : f32
    %44 = vector.broadcast %cst_23 : f32 to vector<8x8xf32>
    %45 = arith.mulf %44, %40 : vector<8x8xf32>
    %46 = arith.subf %43, %45 : vector<8x8xf32>
    %cst_24 = arith.constant 0.000000e+00 : f32
    %47 = vector.broadcast %cst_24 : f32 to vector<8x8xf32>
    %48 = arith.maximumf %46, %47 : vector<8x8xf32>
    %49 = math.sqrt %48 : vector<8x8xf32>
    %cst_25 = arith.constant 0.00999999977 : f32
    %50 = vector.broadcast %cst_25 : f32 to vector<8x8xf32>
    %51 = arith.addf %49, %50 : vector<8x8xf32>
    %cst_26 = arith.constant 1.000000e+00 : f32
    %52 = vector.broadcast %cst_26 : f32 to vector<8x8xf32>
    %53 = arith.divf %52, %51 : vector<8x8xf32>
    %54 = arith.mulf %53, %1 : vector<8x8xf32>
    %55 = math.absf %54 : vector<8x8xf32>
    %cst_27 = arith.constant dense<0.000000e+00> : vector<8xf32>
    %56 = vector.multi_reduction <add>, %55, %cst_27 [1] : vector<8x8xf32> to vector<8xf32>
    %57 = vector.shape_cast %56 : vector<8xf32> to vector<8x1xf32>
    %cst_28 = arith.constant 9.99999996E-13 : f32
    %58 = vector.broadcast %cst_28 : f32 to vector<8x1xf32>
    %59 = arith.maximumf %57, %58 : vector<8x1xf32>
    %cst_29 = arith.constant dense<0.000000e+00> : vector<8x128xf32>
    %60 = tpu.matmul %54, %3, %cst_29 {dimension_numbers = #tpu.dot_dimension_numbers<[1], [0], [0], [1], [0, 0, 1, 1], [], []>} : vector<8x8xf32>, vector<8x128xf32>, vector<8x128xf32> -> vector<8x128xf32>
    %cst_30 = arith.constant 1.000000e+00 : f32
    %61 = vector.broadcast %cst_30 : f32 to vector<8x1xf32>
    %62 = arith.divf %61, %59 : vector<8x1xf32>
    %63 = vector.broadcast %62 : vector<8x1xf32> to vector<8x128xf32>
    %64 = arith.mulf %60, %63 : vector<8x128xf32>
    %65 = arith.mulf %64, %64 : vector<8x128xf32>
    %cst_31 = arith.constant dense<0.000000e+00> : vector<8xf32>
    %66 = vector.multi_reduction <add>, %65, %cst_31 [1] : vector<8x128xf32> to vector<8xf32>
    %67 = vector.shape_cast %66 : vector<8xf32> to vector<8x1xf32>
    %cst_32 = arith.constant dense<0.000000e+00> : vector<8x8xf32>
    %68 = tpu.matmul %64, %5, %cst_32 {dimension_numbers = #tpu.dot_dimension_numbers<[1], [0], [0], [1], [0, 0, 1, 1], [], []>} : vector<8x128xf32>, vector<128x8xf32>, vector<8x8xf32> -> vector<8x8xf32>
    %69 = vector.broadcast %67 : vector<8x1xf32> to vector<8x8xf32>
    %70 = vector.broadcast %7 : vector<1x8xf32> to vector<8x8xf32>
    %71 = arith.addf %69, %70 : vector<8x8xf32>
    %cst_33 = arith.constant 2.000000e+00 : f32
    %72 = vector.broadcast %cst_33 : f32 to vector<8x8xf32>
    %73 = arith.mulf %72, %68 : vector<8x8xf32>
    %74 = arith.subf %71, %73 : vector<8x8xf32>
    %cst_34 = arith.constant 0.000000e+00 : f32
    %75 = vector.broadcast %cst_34 : f32 to vector<8x8xf32>
    %76 = arith.maximumf %74, %75 : vector<8x8xf32>
    %77 = math.sqrt %76 : vector<8x8xf32>
    %cst_35 = arith.constant 0.00999999977 : f32
    %78 = vector.broadcast %cst_35 : f32 to vector<8x8xf32>
    %79 = arith.addf %77, %78 : vector<8x8xf32>
    %cst_36 = arith.constant 1.000000e+00 : f32
    %80 = vector.broadcast %cst_36 : f32 to vector<8x8xf32>
    %81 = arith.divf %80, %79 : vector<8x8xf32>
    %82 = arith.mulf %81, %1 : vector<8x8xf32>
    %83 = math.absf %82 : vector<8x8xf32>
    %cst_37 = arith.constant dense<0.000000e+00> : vector<8xf32>
    %84 = vector.multi_reduction <add>, %83, %cst_37 [1] : vector<8x8xf32> to vector<8xf32>
    %85 = vector.shape_cast %84 : vector<8xf32> to vector<8x1xf32>
    %cst_38 = arith.constant 9.99999996E-13 : f32
    %86 = vector.broadcast %cst_38 : f32 to vector<8x1xf32>
    %87 = arith.maximumf %85, %86 : vector<8x1xf32>
    %cst_39 = arith.constant dense<0.000000e+00> : vector<8x128xf32>
    %88 = tpu.matmul %82, %3, %cst_39 {dimension_numbers = #tpu.dot_dimension_numbers<[1], [0], [0], [1], [0, 0, 1, 1], [], []>} : vector<8x8xf32>, vector<8x128xf32>, vector<8x128xf32> -> vector<8x128xf32>
    %cst_40 = arith.constant 1.000000e+00 : f32
    %89 = vector.broadcast %cst_40 : f32 to vector<8x1xf32>
    %90 = arith.divf %89, %87 : vector<8x1xf32>
    %91 = vector.broadcast %90 : vector<8x1xf32> to vector<8x128xf32>
    %92 = arith.mulf %88, %91 : vector<8x128xf32>
    %c0_41 = arith.constant 0 : index
    %c0_42 = arith.constant 0 : index
    %c0_43 = arith.constant 0 : index
    %93 = vector.load %arg6[%c0_41, %c0_42, %c0_43] : memref<1x8x128xf32, #tpu.memory_space<vmem>>, vector<1x8x128xf32>
    %94 = vector.shape_cast %93 : vector<1x8x128xf32> to vector<8x128xf32>
    %95 = vector.shape_cast %92 : vector<8x128xf32> to vector<1x8x128xf32>
    tpu.vector_store %arg6[%c0_41, %c0_42, %c0_43], %95 {strides = array<i32>} : memref<1x8x128xf32, #tpu.memory_space<vmem>>, vector<1x8x128xf32>,
    return
  }
  func.func @transform_0(%arg0: i32, %arg1: i32) -> (i32, i32, i32) {
    %c0_i32 = arith.constant 0 : i32
    %c0_i32_0 = arith.constant 0 : i32
    return %arg0, %arg1, %c0_i32 : i32, i32, i32
  }
  func.func @transform_1(%arg0: i32, %arg1: i32) -> (i32, i32, i32) {
    %c0_i32 = arith.constant 0 : i32
    %c0_i32_0 = arith.constant 0 : i32
    %c0_i32_1 = arith.constant 0 : i32
    return %arg0, %c0_i32, %c0_i32_0 : i32, i32, i32
  }
  func.func @transform_2(%arg0: i32, %arg1: i32) -> (i32, i32, i32) {
    %c0_i32 = arith.constant 0 : i32
    %c0_i32_0 = arith.constant 0 : i32
    %c0_i32_1 = arith.constant 0 : i32
    return %arg0, %c0_i32, %c0_i32_0 : i32, i32, i32
  }
  func.func @transform_3(%arg0: i32, %arg1: i32) -> (i32, i32, i32) {
    %c0_i32 = arith.constant 0 : i32
    %c0_i32_0 = arith.constant 0 : i32
    %c0_i32_1 = arith.constant 0 : i32
    return %arg0, %c0_i32, %c0_i32_0 : i32, i32, i32
  }
  func.func @transform_4(%arg0: i32, %arg1: i32) -> (i32, i32, i32) {
    %c0_i32 = arith.constant 0 : i32
    %c0_i32_0 = arith.constant 0 : i32
    return %arg0, %arg1, %c0_i32 : i32, i32, i32
  }
}

</mosaic_0001>

<llo_original>
// kernel: tpu_custom_call.1
$region0: #{tpu_custom_call.1}
  #allocation0 [shape = 'u32[]', space=smem, size = 0x4, offset = 0x4, fixed_abs, tag = 'smem constant byte address 0x4 - core index']
  #allocation1 [shape = 'u32[144,128]{1,0:T(1,128)}', space=vmem, size = 0x12000, scoped, tag = 'internal scratch']
  %s0 = inlined_call_operand.vmem [shape: f32[2,8,8], index: 0, kind: input, shape index: {}]
  %s1 = inlined_call_operand.vmem [shape: f32[2,8,128], index: 1, kind: input, shape index: {}]
  %s2 = inlined_call_operand.vmem [shape: f32[2,128,8], index: 2, kind: input, shape index: {}]
  %s3 = inlined_call_operand.vmem [shape: f32[2,1,8], index: 3, kind: input, shape index: {}]
  %s4 = inlined_call_operand.hbm [shape: f32[2,8,128], index: 4, kind: output, shape index: {}]
  %s5 = sld [smem:[#allocation0]]
  $region49: #{tpu_custom_call.1} parent=0
    _
  %s7 = ssub.s32 1, %s5
  %s8 = scalar_select 0, %s7, %s5
  $region1: #{tpu_custom_call.1} parent=0
    #allocation2 [shape = 'u8[8192]{0}', space=vmem, size = 0x2000, scoped, tag = 'output window, operand 0']
    #allocation3 [shape = 's32[2]{0}', space=sflag, size = 0x8, scoped, tag = 'scoped memory for tpu_custom_call.1']
    %9 = vsyncpa [#allocation3], 0
    %s10 = scalar_lea.sflag [#allocation3], 1
    %11 = vsyncpa %s10, 0
    loop: start=0, step=1, limit=4
    $region2: #{tpu_custom_call.1} parent=1 // loop_pre_header
      _
    $region3: #{tpu_custom_call.1} parent=1 // loop_header
      %s13 = sphi 0, %s17
      %p14 = scmp.ge.s32.totalorder %s13, 4
      %s20 = sphi 0, %s32
      %s21 = sphi 0, %s28
      %s22 = sphi 0, %s20
      %s23 = sphi 0, %s21
      %s24 = sphi 0, %s22
      %s25 = sphi 0, %s23
      %s37 = sphi 0, %s39
      %s40 = sphi 0, %s37
      %s41 = sphi 0, %s40
      %s57 = sphi 0, %s41
      %s63 = sphi 0, %s65
      %s66 = sphi 0, %s63
      %s67 = sphi 0, %s66
      %s83 = sphi 0, %s67
      %s89 = sphi 0, %s91
      %s92 = sphi 0, %s89
      %s93 = sphi 0, %s92
      %s109 = sphi 0, %s93
      %s115 = sphi 0, %s117
      %s118 = sphi 0, %s115
      %s119 = sphi 0, %s118
      %s135 = sphi 0, %s119
      %s143 = sphi 0, %s145
      %s146 = sphi 0, %s143
      %s147 = sphi 0, %s146
      %s163 = sphi 0, %s147
    $region4: #{tpu_custom_call.1} parent=1 // loop_header_branch
      %16 = sbr.rel (%p14) target = $region8
    $region5: #{tpu_custom_call.1} parent=1 // loop_body
      %s18 = ssub.s32 %s13, 1
      %s19 = ssub.s32 %s13, 2
      %s26 = sadd.s32 1, %s21
      %p27 = scmp.ge.s32.totalorder %s26, 1
      %s28 = scalar_select %p27, 0, %s26
      %s29 = sadd.s32 1, %s20
      %s30 = scalar_select %p27, %s29, %s20
      %p31 = scmp.ge.s32.totalorder %s30, 2
      %s32 = scalar_select %p31, 0, %s30
      %s33 = ssub.s32 %s20, %s32
      %s34 = ssub.s32 %s21, %s28
      %s35 = sor.u32 %s33, %s34
      %p36 = scmp.eq.s32.totalorder %s35, 0
      %s38 = sadd.s32 %s37, 1
      %s39 = scalar_select %p36, %s37, %s38
      %p42 = pneg %p36
      %p43 = scmp.eq.s32.totalorder %s13, 1
      %p44 = por %p42, %p43
      %p45 = scmp.ne.s32.totalorder %s37, %s40
      %p46 = scmp.eq.s32.totalorder %s13, 0
      %p47 = por %p45, %p46
      %p48 = scmp.ne.s32.totalorder %s37, %s40
      %p49 = scmp.eq.s32.totalorder %s18, 1
      %p50 = por %p48, %p49
      %p51 = scmp.ne.s32.totalorder %s40, %s41
      %p52 = scmp.eq.s32.totalorder %s18, 0
      %p53 = por %p51, %p52
      %p54 = scmp.ne.s32.totalorder %s40, %s41
      %p55 = scmp.eq.s32.totalorder %s19, 1
      %p56 = por %p54, %p55
      %p58 = scmp.ne.s32.totalorder %s41, %s57
      %p59 = scmp.eq.s32.totalorder %s19, 0
      %p60 = por %p58, %p59
      %s61 = ssub.s32 %s20, %s32
      %p62 = scmp.eq.s32.totalorder %s61, 0
      %s64 = sadd.s32 %s63, 1
      %s65 = scalar_select %p62, %s63, %s64
      %p68 = pneg %p62
      %p69 = scmp.eq.s32.totalorder %s13, 1
      %p70 = por %p68, %p69
      %p71 = scmp.ne.s32.totalorder %s63, %s66
      %p72 = scmp.eq.s32.totalorder %s13, 0
      %p73 = por %p71, %p72
      %p74 = scmp.ne.s32.totalorder %s63, %s66
      %p75 = scmp.eq.s32.totalorder %s18, 1
      %p76 = por %p74, %p75
      %p77 = scmp.ne.s32.totalorder %s66, %s67
      %p78 = scmp.eq.s32.totalorder %s18, 0
      %p79 = por %p77, %p78
      %p80 = scmp.ne.s32.totalorder %s66, %s67
      %p81 = scmp.eq.s32.totalorder %s19, 1
      %p82 = por %p80, %p81
      %p84 = scmp.ne.s32.totalorder %s67, %s83
      %p85 = scmp.eq.s32.totalorder %s19, 0
      %p86 = por %p84, %p85
      %s87 = ssub.s32 %s20, %s32
      %p88 = scmp.eq.s32.totalorder %s87, 0
      %s90 = sadd.s32 %s89, 1
      %s91 = scalar_select %p88, %s89, %s90
      %p94 = pneg %p88
      %p95 = scmp.eq.s32.totalorder %s13, 1
      %p96 = por %p94, %p95
      %p97 = scmp.ne.s32.totalorder %s89, %s92
      %p98 = scmp.eq.s32.totalorder %s13, 0
      %p99 = por %p97, %p98
      %p100 = scmp.ne.s32.totalorder %s89, %s92
      %p101 = scmp.eq.s32.totalorder %s18, 1
      %p102 = por %p100, %p101
      %p103 = scmp.ne.s32.totalorder %s92, %s93
      %p104 = scmp.eq.s32.totalorder %s18, 0
      %p105 = por %p103, %p104
      %p106 = scmp.ne.s32.totalorder %s92, %s93
      %p107 = scmp.eq.s32.totalorder %s19, 1
      %p108 = por %p106, %p107
      %p110 = scmp.ne.s32.totalorder %s93, %s109
      %p111 = scmp.eq.s32.totalorder %s19, 0
      %p112 = por %p110, %p111
      %s113 = ssub.s32 %s20, %s32
      %p114 = scmp.eq.s32.totalorder %s113, 0
      %s116 = sadd.s32 %s115, 1
      %s117 = scalar_select %p114, %s115, %s116
      %p120 = pneg %p114
      %p121 = scmp.eq.s32.totalorder %s13, 1
      %p122 = por %p120, %p121
      %p123 = scmp.ne.s32.totalorder %s115, %s118
      %p124 = scmp.eq.s32.totalorder %s13, 0
      %p125 = por %p123, %p124
      %p126 = scmp.ne.s32.totalorder %s115, %s118
      %p127 = scmp.eq.s32.totalorder %s18, 1
      %p128 = por %p126, %p127
      %p129 = scmp.ne.s32.totalorder %s118, %s119
      %p130 = scmp.eq.s32.totalorder %s18, 0
      %p131 = por %p129, %p130
      %p132 = scmp.ne.s32.totalorder %s118, %s119
      %p133 = scmp.eq.s32.totalorder %s19, 1
      %p134 = por %p132, %p133
      %p136 = scmp.ne.s32.totalorder %s119, %s135
      %p137 = scmp.eq.s32.totalorder %s19, 0
      %p138 = por %p136, %p137
      %s139 = ssub.s32 %s20, %s32
      %s140 = ssub.s32 %s21, %s28
      %s141 = sor.u32 %s139, %s140
      %p142 = scmp.eq.s32.totalorder %s141, 0
      %s144 = sadd.s32 %s143, 1
      %s145 = scalar_select %p142, %s143, %s144
      %p148 = pneg %p142
      %p149 = scmp.eq.s32.totalorder %s13, 1
      %p150 = por %p148, %p149
      %p151 = scmp.ne.s32.totalorder %s143, %s146
      %p152 = scmp.eq.s32.totalorder %s13, 0
      %p153 = por %p151, %p152
      %p154 = scmp.ne.s32.totalorder %s143, %s146
      %p155 = scmp.eq.s32.totalorder %s18, 1
      %p156 = por %p154, %p155
      %p157 = scmp.ne.s32.totalorder %s146, %s147
      %p158 = scmp.eq.s32.totalorder %s18, 0
      %p159 = por %p157, %p158
      %p160 = scmp.ne.s32.totalorder %s146, %s147
      %p161 = scmp.eq.s32.totalorder %s19, 1
      %p162 = por %p160, %p161
      %p164 = scmp.ne.s32.totalorder %s147, %s163
      %p165 = scmp.eq.s32.totalorder %s19, 0
      %p166 = por %p164, %p165
      %p167 = scmp.le.s32.totalorder 1, %s13
      %p168 = scmp.lt.s32.totalorder %s13, 3
      %p169 = pnand %p167, %p168
      %p170 = pneg %p169
      // Predicated region
      $region9: #{tpu_custom_call.1} parent=5 // pred_check
        _
      $region10: #{tpu_custom_call.1} parent=5 // pred_check_branch
        %172 = sbr.rel (%p169) target = $region12
      $region11: #{tpu_custom_call.1} parent=5 // pred_region
        %s173 = ssub.s32 %s13, 1
      $region12: #{tpu_custom_call.1} parent=5 // pred_fallthru
        _
      %p174 = scmp.lt.s32.totalorder %s13, 2
      // Predicated region
      $region13: #{tpu_custom_call.1} parent=5 // pred_check
        %p175 = pneg %p174
      $region14: #{tpu_custom_call.1} parent=5 // pred_check_branch
        %177 = sbr.rel (%p175) target = $region16
      $region15: #{tpu_custom_call.1} parent=5 // pred_region
        // Predicated region
        $region17: #{tpu_custom_call.1} parent=15 // pred_check
          %p178 = pneg %p47
        $region18: #{tpu_custom_call.1} parent=15 // pred_check_branch
          %180 = sbr.rel (%p178) target = $region20
        $region19: #{tpu_custom_call.1} parent=15 // pred_region
          %p181 = scmp.lt.s32.totalorder %s20, 1
          %s182 = scalar_select %p181, %s20, 1
          %p183 = scmp.lt.s32.totalorder %s21, 0
          %s184 = scalar_select %p183, %s21, 0
          %s185 = sadd.s32 %s184, %s182
          %s186 = smul.addr %s185, 8
          %s187 = scalar_lea.vmem %s0, %s186
        $region20: #{tpu_custom_call.1} parent=15 // pred_fallthru
          _
        // Predicated region
        $region21: #{tpu_custom_call.1} parent=15 // pred_check
          %p188 = pneg %p73
        $region22: #{tpu_custom_call.1} parent=15 // pred_check_branch
          %190 = sbr.rel (%p188) target = $region24
        $region23: #{tpu_custom_call.1} parent=15 // pred_region
          %p191 = scmp.lt.s32.totalorder %s20, 1
          %s192 = scalar_select %p191, %s20, 1
          %s193 = smul.addr %s192, 8
          %s194 = scalar_lea.vmem %s1, %s193
        $region24: #{tpu_custom_call.1} parent=15 // pred_fallthru
          _
        // Predicated region
        $region25: #{tpu_custom_call.1} parent=15 // pred_check
          %p195 = pneg %p99
        $region26: #{tpu_custom_call.1} parent=15 // pred_check_branch
          %197 = sbr.rel (%p195) target = $region28
        $region27: #{tpu_custom_call.1} parent=15 // pred_region
          %p198 = scmp.lt.s32.totalorder %s20, 1
          %s199 = scalar_select %p198, %s20, 1
          %s200 = smul.addr %s199, 16
          %s201 = smul.addr %s200, 8
          %s202 = scalar_lea.vmem %s2, %s201
        $region28: #{tpu_custom_call.1} parent=15 // pred_fallthru
          _
        // Predicated region
        $region29: #{tpu_custom_call.1} parent=15 // pred_check
          %p203 = pneg %p125
        $region30: #{tpu_custom_call.1} parent=15 // pred_check_branch
          %205 = sbr.rel (%p203) target = $region32
        $region31: #{tpu_custom_call.1} parent=15 // pred_region
          %p206 = scmp.lt.s32.totalorder %s20, 1
          %s207 = scalar_select %p206, %s20, 1
          %s208 = scalar_lea.vmem %s3, %s207
        $region32: #{tpu_custom_call.1} parent=15 // pred_fallthru
          _
      $region16: #{tpu_custom_call.1} parent=5 // pred_fallthru
        _
      %p209 = scmp.le.s32.totalorder 1, %s13
      %p210 = scmp.lt.s32.totalorder %s13, 3
      %p211 = pnand %p209, %p210
      %p212 = pneg %p211
      // Predicated region
      $region33: #{tpu_custom_call.1} parent=5 // pred_check
        _
      $region34: #{tpu_custom_call.1} parent=5 // pred_check_branch
        %214 = sbr.rel (%p211) target = $region36
      $region35: #{tpu_custom_call.1} parent=5 // pred_region
        %s215 = ssub.s32 %s13, 1
        %p216 = scmp.lt.s32.totalorder %s22, 1
        %s217 = scalar_select %p216, %s22, 1
        %p218 = scmp.lt.s32.totalorder %s23, 0
        %s219 = scalar_select %p218, %s23, 0
        %s220 = sadd.s32 %s219, %s217
        %s221 = smul.addr %s220, 8
        %s222 = scalar_lea.vmem %s0, %s221
        %p223 = pneg %p53
        %p224 = pneg %p50
        %p225 = scmp.lt.s32.totalorder %s22, 1
        %s226 = scalar_select %p225, %s22, 1
        %s227 = smul.addr %s226, 8
        %s228 = scalar_lea.vmem %s1, %s227
        %p229 = pneg %p79
        %p230 = pneg %p76
        %p231 = scmp.lt.s32.totalorder %s22, 1
        %s232 = scalar_select %p231, %s22, 1
        %s233 = smul.addr %s232, 16
        %s234 = smul.addr %s233, 8
        %s235 = scalar_lea.vmem %s2, %s234
        %p236 = pneg %p105
        %p237 = pneg %p102
        %p238 = scmp.lt.s32.totalorder %s22, 1
        %s239 = scalar_select %p238, %s22, 1
        %s240 = scalar_lea.vmem %s3, %s239
        %p241 = pneg %p131
        %p242 = pneg %p128
        %p243 = pneg %p159
        %p244 = pneg %p156
        %s245 = sand.u32 %s146, 1
        %s246 = scalar_lea.sflag [#allocation3], %s245
        %s247 = sand.u32 %s146, 1
        %s248 = smul.addr %s247, 8
        %s249 = scalar_lea.vmem [#allocation2], %s248
        %p250 = scmp.lt.s32.totalorder %s22, 1
        %s251 = scalar_select %p250, %s22, 1
        %p252 = scmp.lt.s32.totalorder %s23, 0
        %s253 = scalar_select %p252, %s23, 0
        %s254 = sadd.s32 %s253, %s251
        %s255 = smul.addr %s254, 8
        %s256 = scalar_lea.vmem %s0, %s255
        %p257 = scmp.lt.s32.totalorder %s22, 1
        %s258 = scalar_select %p257, %s22, 1
        %s259 = smul.addr %s258, 8
        %s260 = scalar_lea.vmem %s1, %s259
        %p261 = scmp.lt.s32.totalorder %s22, 1
        %s262 = scalar_select %p261, %s22, 1
        %s263 = smul.addr %s262, 16
        %s264 = smul.addr %s263, 8
        %s265 = scalar_lea.vmem %s2, %s264
        %p266 = scmp.lt.s32.totalorder %s22, 1
        %s267 = scalar_select %p266, %s22, 1
        %s268 = scalar_lea.vmem %s3, %s267
        %v269 = vld [vmem:[%s256] sm:$0xff]
        %v270 = vld [vmem:[%s260] sm:$0xff]
        %v271 = vld [vmem:[%s265] sm:$0xff]
        %v272 = vld [vmem:[%s265 + $0x8] sm:$0xff]
        %v273 = vld [vmem:[%s265 + $0x10] sm:$0xff]
        %v274 = vld [vmem:[%s265 + $0x18] sm:$0xff]
        %v275 = vld [vmem:[%s265 + $0x20] sm:$0xff]
        %v276 = vld [vmem:[%s265 + $0x28] sm:$0xff]
        %v277 = vld [vmem:[%s265 + $0x30] sm:$0xff]
        %v278 = vld [vmem:[%s265 + $0x38] sm:$0xff]
        %v279 = vld [vmem:[%s265 + $0x40] sm:$0xff]
        %v280 = vld [vmem:[%s265 + $0x48] sm:$0xff]
        %v281 = vld [vmem:[%s265 + $0x50] sm:$0xff]
        %v282 = vld [vmem:[%s265 + $0x58] sm:$0xff]
        %v283 = vld [vmem:[%s265 + $0x60] sm:$0xff]
        %v284 = vld [vmem:[%s265 + $0x68] sm:$0xff]
        %v285 = vld [vmem:[%s265 + $0x70] sm:$0xff]
        %v286 = vld [vmem:[%s265 + $0x78] sm:$0xff]
        %v287 = vld [vmem:[%s268] sm:$0x1]
        %vm288 = vcmask 64512
        %v290 = vsel %vm288, %v269, 0
        %292 = vmatprep.subr.mxu0 0.0
        %293 = vmatpush1.msra.mxu0 %v270
        %294 = vmatprep.subr.mxu0 0.0
        %295 = vmatpush1.msra.mxu0 0.0
        %296 = vmatprep.subr.mxu0 0.0
        %297 = vmatpush1.msra.mxu0 0.0
        %298 = vmatprep.subr.mxu0 0.0
        %299 = vmatpush1.msra.mxu0 0.0
        %300 = vmatprep.subr.mxu0 0.0
        %301 = vmatpush1.msra.mxu0 0.0
        %302 = vmatprep.subr.mxu0 0.0
        %303 = vmatpush1.msra.mxu0 0.0
        %304 = vmatprep.subr.mxu0 0.0
        %305 = vmatpush1.msra.mxu0 0.0
        %306 = vmatprep.subr.mxu0 0.0
        %307 = vmatpush1.msra.mxu0 0.0
        %308 = vmatprep.subr.mxu0 0.0
        %309 = vmatpush1.msra.mxu0 0.0
        %310 = vmatprep.subr.mxu0 0.0
        %311 = vmatpush1.msra.mxu0 0.0
        %312 = vmatprep.subr.mxu0 0.0
        %313 = vmatpush1.msra.mxu0 0.0
        %314 = vmatprep.subr.mxu0 0.0
        %315 = vmatpush1.msra.mxu0 0.0
        %316 = vmatprep.subr.mxu0 0.0
        %317 = vmatpush1.msra.mxu0 0.0
        %318 = vmatprep.subr.mxu0 0.0
        %319 = vmatpush1.msra.mxu0 0.0
        %320 = vmatprep.subr.mxu0 0.0
        %321 = vmatpush1.msra.mxu0 0.0
        %322 = vmatprep.subr.mxu0 0.0
        %323 = vmatpush1.msra.mxu0 0.0
        %324 = vmatprep.subr.mxu0 0.0
        %325 = vmatpush1.msra.mxu0 0.0
        %326 = vmatprep.subr.mxu0 0.0
        %327 = vmatpush1.msra.mxu0 0.0
        %328 = vmatprep.subr.mxu0 0.0
        %329 = vmatpush1.msra.mxu0 0.0
        %330 = vmatprep.subr.mxu0 0.0
        %331 = vmatpush1.msra.mxu0 0.0
        %332 = vmatprep.subr.mxu0 0.0
        %333 = vmatpush1.msra.mxu0 0.0
        %334 = vmatprep.subr.mxu0 0.0
        %335 = vmatpush1.msra.mxu0 0.0
        %336 = vmatprep.subr.mxu0 0.0
        %337 = vmatpush1.msra.mxu0 0.0
        %338 = vmatprep.subr.mxu0 0.0
        %339 = vmatpush1.msra.mxu0 0.0
        %340 = vmatprep.subr.mxu0 0.0
        %341 = vmatpush1.msra.mxu0 0.0
        %342 = vmatprep.subr.mxu0 0.0
        %343 = vmatpush1.msra.mxu0 0.0
        %344 = vmatprep.subr.mxu0 0.0
        %345 = vmatpush1.msra.mxu0 0.0
        %346 = vmatprep.subr.mxu0 0.0
        %347 = vmatpush1.msra.mxu0 0.0
        %348 = vmatprep.subr.mxu0 0.0
        %349 = vmatpush1.msra.mxu0 0.0
        %350 = vmatprep.subr.mxu0 0.0
        %351 = vmatpush1.msra.mxu0 0.0
        %352 = vmatprep.subr.mxu0 0.0
        %353 = vmatpush1.msra.mxu0 0.0
        %354 = vmatprep.subr.mxu0 0.0
        %355 = vmatpush1.msra.mxu0 0.0
        %356 = vmatprep.mubr.f32.mxu0 0.0
        %357 = vmatmul.mubr.f32.gmra.mrb[0].mxu0 %v290
        %v358 = vpop.f32.mrb[0].mxu0
        %v359 = vadd.f32 0.0, %v358
        %v360 = vpop.f32.mrb[0].mxu0
        %361 = vdwg.mxu0
        %v362 = vmul.f32 %v359, %v359
        %363 = vadd.xlane.f32.xlu0 %v362
        %v364 = vpop.xlane.xlu0 %363
        %365 = vmatprep.subr.mxu0 0.0
        %366 = vmatpush1.msra.mxu0 %v271
        %367 = vmatprep.subr.mxu0 0.0
        %368 = vmatpush1.msra.mxu0 %v272
        %369 = vmatprep.subr.mxu0 0.0
        %370 = vmatpush1.msra.mxu0 %v273
        %371 = vmatprep.subr.mxu0 0.0
        %372 = vmatpush1.msra.mxu0 %v274
        %373 = vmatprep.subr.mxu0 0.0
        %374 = vmatpush1.msra.mxu0 %v275
        %375 = vmatprep.subr.mxu0 0.0
        %376 = vmatpush1.msra.mxu0 %v276
        %377 = vmatprep.subr.mxu0 0.0
        %378 = vmatpush1.msra.mxu0 %v277
        %379 = vmatprep.subr.mxu0 0.0
        %380 = vmatpush1.msra.mxu0 %v278
        %381 = vmatprep.subr.mxu0 0.0
        %382 = vmatpush1.msra.mxu0 %v279
        %383 = vmatprep.subr.mxu0 0.0
        %384 = vmatpush1.msra.mxu0 %v280
        %385 = vmatprep.subr.mxu0 0.0
        %386 = vmatpush1.msra.mxu0 %v281
        %387 = vmatprep.subr.mxu0 0.0
        %388 = vmatpush1.msra.mxu0 %v282
        %389 = vmatprep.subr.mxu0 0.0
        %390 = vmatpush1.msra.mxu0 %v283
        %391 = vmatprep.subr.mxu0 0.0
        %392 = vmatpush1.msra.mxu0 %v284
        %393 = vmatprep.subr.mxu0 0.0
        %394 = vmatpush1.msra.mxu0 %v285
        %395 = vmatprep.subr.mxu0 0.0
        %396 = vmatpush1.msra.mxu0 %v286
        %397 = vmatprep.subr.mxu0 0.0
        %398 = vmatpush1.msra.mxu0 0.0
        %399 = vmatprep.subr.mxu0 0.0
        %400 = vmatpush1.msra.mxu0 0.0
        %401 = vmatprep.subr.mxu0 0.0
        %402 = vmatpush1.msra.mxu0 0.0
        %403 = vmatprep.subr.mxu0 0.0
        %404 = vmatpush1.msra.mxu0 0.0
        %405 = vmatprep.subr.mxu0 0.0
        %406 = vmatpush1.msra.mxu0 0.0
        %407 = vmatprep.subr.mxu0 0.0
        %408 = vmatpush1.msra.mxu0 0.0
        %409 = vmatprep.subr.mxu0 0.0
        %410 = vmatpush1.msra.mxu0 0.0
        %411 = vmatprep.subr.mxu0 0.0
        %412 = vmatpush1.msra.mxu0 0.0
        %413 = vmatprep.subr.mxu0 0.0
        %414 = vmatpush1.msra.mxu0 0.0
        %415 = vmatprep.subr.mxu0 0.0
        %416 = vmatpush1.msra.mxu0 0.0
        %417 = vmatprep.subr.mxu0 0.0
        %418 = vmatpush1.msra.mxu0 0.0
        %419 = vmatprep.subr.mxu0 0.0
        %420 = vmatpush1.msra.mxu0 0.0
        %421 = vmatprep.subr.mxu0 0.0
        %422 = vmatpush1.msra.mxu0 0.0
        %423 = vmatprep.subr.mxu0 0.0
        %424 = vmatpush1.msra.mxu0 0.0
        %425 = vmatprep.subr.mxu0 0.0
        %426 = vmatpush1.msra.mxu0 0.0
        %427 = vmatprep.subr.mxu0 0.0
        %428 = vmatpush1.msra.mxu0 0.0
        %429 = vmatprep.mubr.f32.mxu0 0.0
        %430 = vmatmul.mubr.f32.gmra.mrb[0].mxu0 %v359
        %v431 = vpop.f32.mrb[0].mxu0
        %v432 = vadd.f32 0.0, %v431
        %v433 = vpop.f32.mrb[0].mxu0
        %434 = vdwg.mxu0
        %v436 = vlaneseq
        %v437 = vshrl.u32 %v436, 7
        %v438 = vsub.s32 0, %v437
        %v439 = vrot.slane %v287, %v438
        %v441 = vadd.f32 %v364, %v439
        %v442 = vmul.f32 %v432, 2.0
        %v443 = vsub.f32 %v441, %v442
        %v444 = vmax.f32 %v443, 0.0
        %v445 = vrsqrt.pop %v444
        %v446 = vmul.f32 %v444, %v445
        %vm447 = vcmp.eq.f32.partialorder %v444, inf
        %v448 = vsel %vm447, %v444, %v446
        %vm449 = vcmp.eq.f32.partialorder %v444, 0.0
        %v450 = vand.u32 %v444, 2147483648
        %v451 = vsel %vm449, %v450, %v448
        %v452 = vadd.f32 %v451, 0.01
        %v453 = vrcp.pop %v452
        %v454 = vmul.f32 1.0, %v453
        %v455 = vmul.f32 %v454, %v269
        %v456 = vand.u32 2147483647, %v455
        %v457 = vsel %vm288, %v456, 0.0
        %458 = vadd.xlane.f32.xlu0 %v457
        %v459 = vpop.xlane.xlu0 %458
        %v460 = vmax.f32 %v459, 1e-12
        %v462 = vsel %vm288, %v455, 0
        %464 = vmatprep.subr.mxu0 0.0
        %465 = vmatpush1.msra.mxu0 %v270
        %466 = vmatprep.subr.mxu0 0.0
        %467 = vmatpush1.msra.mxu0 0.0
        %468 = vmatprep.subr.mxu0 0.0
        %469 = vmatpush1.msra.mxu0 0.0
        %470 = vmatprep.subr.mxu0 0.0
        %471 = vmatpush1.msra.mxu0 0.0
        %472 = vmatprep.subr.mxu0 0.0
        %473 = vmatpush1.msra.mxu0 0.0
        %474 = vmatprep.subr.mxu0 0.0
        %475 = vmatpush1.msra.mxu0 0.0
        %476 = vmatprep.subr.mxu0 0.0
        %477 = vmatpush1.msra.mxu0 0.0
        %478 = vmatprep.subr.mxu0 0.0
        %479 = vmatpush1.msra.mxu0 0.0
        %480 = vmatprep.subr.mxu0 0.0
        %481 = vmatpush1.msra.mxu0 0.0
        %482 = vmatprep.subr.mxu0 0.0
        %483 = vmatpush1.msra.mxu0 0.0
        %484 = vmatprep.subr.mxu0 0.0
        %485 = vmatpush1.msra.mxu0 0.0
        %486 = vmatprep.subr.mxu0 0.0
        %487 = vmatpush1.msra.mxu0 0.0
        %488 = vmatprep.subr.mxu0 0.0
        %489 = vmatpush1.msra.mxu0 0.0
        %490 = vmatprep.subr.mxu0 0.0
        %491 = vmatpush1.msra.mxu0 0.0
        %492 = vmatprep.subr.mxu0 0.0
        %493 = vmatpush1.msra.mxu0 0.0
        %494 = vmatprep.subr.mxu0 0.0
        %495 = vmatpush1.msra.mxu0 0.0
        %496 = vmatprep.subr.mxu0 0.0
        %497 = vmatpush1.msra.mxu0 0.0
        %498 = vmatprep.subr.mxu0 0.0
        %499 = vmatpush1.msra.mxu0 0.0
        %500 = vmatprep.subr.mxu0 0.0
        %501 = vmatpush1.msra.mxu0 0.0
        %502 = vmatprep.subr.mxu0 0.0
        %503 = vmatpush1.msra.mxu0 0.0
        %504 = vmatprep.subr.mxu0 0.0
        %505 = vmatpush1.msra.mxu0 0.0
        %506 = vmatprep.subr.mxu0 0.0
        %507 = vmatpush1.msra.mxu0 0.0
        %508 = vmatprep.subr.mxu0 0.0
        %509 = vmatpush1.msra.mxu0 0.0
        %510 = vmatprep.subr.mxu0 0.0
        %511 = vmatpush1.msra.mxu0 0.0
        %512 = vmatprep.subr.mxu0 0.0
        %513 = vmatpush1.msra.mxu0 0.0
        %514 = vmatprep.subr.mxu0 0.0
        %515 = vmatpush1.msra.mxu0 0.0
        %516 = vmatprep.subr.mxu0 0.0
        %517 = vmatpush1.msra.mxu0 0.0
        %518 = vmatprep.subr.mxu0 0.0
        %519 = vmatpush1.msra.mxu0 0.0
        %520 = vmatprep.subr.mxu0 0.0
        %521 = vmatpush1.msra.mxu0 0.0
        %522 = vmatprep.subr.mxu0 0.0
        %523 = vmatpush1.msra.mxu0 0.0
        %524 = vmatprep.subr.mxu0 0.0
        %525 = vmatpush1.msra.mxu0 0.0
        %526 = vmatprep.subr.mxu0 0.0
        %527 = vmatpush1.msra.mxu0 0.0
        %528 = vmatprep.mubr.f32.mxu0 0.0
        %529 = vmatmul.mubr.f32.gmra.mrb[0].mxu0 %v462
        %v530 = vpop.f32.mrb[0].mxu0
        %v531 = vadd.f32 0.0, %v530
        %v532 = vpop.f32.mrb[0].mxu0
        %533 = vdwg.mxu0
        %v534 = vrcp.pop %v460
        %v535 = vmul.f32 1.0, %v534
        %v536 = vmul.f32 %v531, %v535
        %v537 = vmul.f32 %v536, %v536
        %538 = vadd.xlane.f32.xlu0 %v537
        %v539 = vpop.xlane.xlu0 %538
        %540 = vmatprep.subr.mxu0 0.0
        %541 = vmatpush1.msra.mxu0 %v271
        %542 = vmatprep.subr.mxu0 0.0
        %543 = vmatpush1.msra.mxu0 %v272
        %544 = vmatprep.subr.mxu0 0.0
        %545 = vmatpush1.msra.mxu0 %v273
        %546 = vmatprep.subr.mxu0 0.0
        %547 = vmatpush1.msra.mxu0 %v274
        %548 = vmatprep.subr.mxu0 0.0
        %549 = vmatpush1.msra.mxu0 %v275
        %550 = vmatprep.subr.mxu0 0.0
        %551 = vmatpush1.msra.mxu0 %v276
        %552 = vmatprep.subr.mxu0 0.0
        %553 = vmatpush1.msra.mxu0 %v277
        %554 = vmatprep.subr.mxu0 0.0
        %555 = vmatpush1.msra.mxu0 %v278
        %556 = vmatprep.subr.mxu0 0.0
        %557 = vmatpush1.msra.mxu0 %v279
        %558 = vmatprep.subr.mxu0 0.0
        %559 = vmatpush1.msra.mxu0 %v280
        %560 = vmatprep.subr.mxu0 0.0
        %561 = vmatpush1.msra.mxu0 %v281
        %562 = vmatprep.subr.mxu0 0.0
        %563 = vmatpush1.msra.mxu0 %v282
        %564 = vmatprep.subr.mxu0 0.0
        %565 = vmatpush1.msra.mxu0 %v283
        %566 = vmatprep.subr.mxu0 0.0
        %567 = vmatpush1.msra.mxu0 %v284
        %568 = vmatprep.subr.mxu0 0.0
        %569 = vmatpush1.msra.mxu0 %v285
        %570 = vmatprep.subr.mxu0 0.0
        %571 = vmatpush1.msra.mxu0 %v286
        %572 = vmatprep.subr.mxu0 0.0
        %573 = vmatpush1.msra.mxu0 0.0
        %574 = vmatprep.subr.mxu0 0.0
        %575 = vmatpush1.msra.mxu0 0.0
        %576 = vmatprep.subr.mxu0 0.0
        %577 = vmatpush1.msra.mxu0 0.0
        %578 = vmatprep.subr.mxu0 0.0
        %579 = vmatpush1.msra.mxu0 0.0
        %580 = vmatprep.subr.mxu0 0.0
        %581 = vmatpush1.msra.mxu0 0.0
        %582 = vmatprep.subr.mxu0 0.0
        %583 = vmatpush1.msra.mxu0 0.0
        %584 = vmatprep.subr.mxu0 0.0
        %585 = vmatpush1.msra.mxu0 0.0
        %586 = vmatprep.subr.mxu0 0.0
        %587 = vmatpush1.msra.mxu0 0.0
        %588 = vmatprep.subr.mxu0 0.0
        %589 = vmatpush1.msra.mxu0 0.0
        %590 = vmatprep.subr.mxu0 0.0
        %591 = vmatpush1.msra.mxu0 0.0
        %592 = vmatprep.subr.mxu0 0.0
        %593 = vmatpush1.msra.mxu0 0.0
        %594 = vmatprep.subr.mxu0 0.0
        %595 = vmatpush1.msra.mxu0 0.0
        %596 = vmatprep.subr.mxu0 0.0
        %597 = vmatpush1.msra.mxu0 0.0
        %598 = vmatprep.subr.mxu0 0.0
        %599 = vmatpush1.msra.mxu0 0.0
        %600 = vmatprep.subr.mxu0 0.0
        %601 = vmatpush1.msra.mxu0 0.0
        %602 = vmatprep.subr.mxu0 0.0
        %603 = vmatpush1.msra.mxu0 0.0
        %604 = vmatprep.mubr.f32.mxu0 0.0
        %605 = vmatmul.mubr.f32.gmra.mrb[0].mxu0 %v536
        %v606 = vpop.f32.mrb[0].mxu0
        %v607 = vadd.f32 0.0, %v606
        %v608 = vpop.f32.mrb[0].mxu0
        %609 = vdwg.mxu0
        %v610 = vadd.f32 %v539, %v439
        %v611 = vmul.f32 %v607, 2.0
        %v612 = vsub.f32 %v610, %v611
        %v613 = vmax.f32 %v612, 0.0
        %v614 = vrsqrt.pop %v613
        %v615 = vmul.f32 %v613, %v614
        %vm616 = vcmp.eq.f32.partialorder %v613, inf
        %v617 = vsel %vm616, %v613, %v615
        %vm618 = vcmp.eq.f32.partialorder %v613, 0.0
        %v619 = vand.u32 %v613, 2147483648
        %v620 = vsel %vm618, %v619, %v617
        %v621 = vadd.f32 %v620, 0.01
        %v622 = vrcp.pop %v621
        %v623 = vmul.f32 1.0, %v622
        %v624 = vmul.f32 %v623, %v269
        %v625 = vand.u32 2147483647, %v624
        %v626 = vsel %vm288, %v625, 0.0
        %627 = vadd.xlane.f32.xlu0 %v626
        %v628 = vpop.xlane.xlu0 %627
        %v629 = vmax.f32 %v628, 1e-12
        %v631 = vsel %vm288, %v624, 0
        %633 = vmatprep.subr.mxu0 0.0
        %634 = vmatpush1.msra.mxu0 %v270
        %635 = vmatprep.subr.mxu0 0.0
        %636 = vmatpush1.msra.mxu0 0.0
        %637 = vmatprep.subr.mxu0 0.0
        %638 = vmatpush1.msra.mxu0 0.0
        %639 = vmatprep.subr.mxu0 0.0
        %640 = vmatpush1.msra.mxu0 0.0
        %641 = vmatprep.subr.mxu0 0.0
        %642 = vmatpush1.msra.mxu0 0.0
        %643 = vmatprep.subr.mxu0 0.0
        %644 = vmatpush1.msra.mxu0 0.0
        %645 = vmatprep.subr.mxu0 0.0
        %646 = vmatpush1.msra.mxu0 0.0
        %647 = vmatprep.subr.mxu0 0.0
        %648 = vmatpush1.msra.mxu0 0.0
        %649 = vmatprep.subr.mxu0 0.0
        %650 = vmatpush1.msra.mxu0 0.0
        %651 = vmatprep.subr.mxu0 0.0
        %652 = vmatpush1.msra.mxu0 0.0
        %653 = vmatprep.subr.mxu0 0.0
        %654 = vmatpush1.msra.mxu0 0.0
        %655 = vmatprep.subr.mxu0 0.0
        %656 = vmatpush1.msra.mxu0 0.0
        %657 = vmatprep.subr.mxu0 0.0
        %658 = vmatpush1.msra.mxu0 0.0
        %659 = vmatprep.subr.mxu0 0.0
        %660 = vmatpush1.msra.mxu0 0.0
        %661 = vmatprep.subr.mxu0 0.0
        %662 = vmatpush1.msra.mxu0 0.0
        %663 = vmatprep.subr.mxu0 0.0
        %664 = vmatpush1.msra.mxu0 0.0
        %665 = vmatprep.subr.mxu0 0.0
        %666 = vmatpush1.msra.mxu0 0.0
        %667 = vmatprep.subr.mxu0 0.0
        %668 = vmatpush1.msra.mxu0 0.0
        %669 = vmatprep.subr.mxu0 0.0
        %670 = vmatpush1.msra.mxu0 0.0
        %671 = vmatprep.subr.mxu0 0.0
        %672 = vmatpush1.msra.mxu0 0.0
        %673 = vmatprep.subr.mxu0 0.0
        %674 = vmatpush1.msra.mxu0 0.0
        %675 = vmatprep.subr.mxu0 0.0
        %676 = vmatpush1.msra.mxu0 0.0
        %677 = vmatprep.subr.mxu0 0.0
        %678 = vmatpush1.msra.mxu0 0.0
        %679 = vmatprep.subr.mxu0 0.0
        %680 = vmatpush1.msra.mxu0 0.0
        %681 = vmatprep.subr.mxu0 0.0
        %682 = vmatpush1.msra.mxu0 0.0
        %683 = vmatprep.subr.mxu0 0.0
        %684 = vmatpush1.msra.mxu0 0.0
        %685 = vmatprep.subr.mxu0 0.0
        %686 = vmatpush1.msra.mxu0 0.0
        %687 = vmatprep.subr.mxu0 0.0
        %688 = vmatpush1.msra.mxu0 0.0
        %689 = vmatprep.subr.mxu0 0.0
        %690 = vmatpush1.msra.mxu0 0.0
        %691 = vmatprep.subr.mxu0 0.0
        %692 = vmatpush1.msra.mxu0 0.0
        %693 = vmatprep.subr.mxu0 0.0
        %694 = vmatpush1.msra.mxu0 0.0
        %695 = vmatprep.subr.mxu0 0.0
        %696 = vmatpush1.msra.mxu0 0.0
        %697 = vmatprep.mubr.f32.mxu0 0.0
        %698 = vmatmul.mubr.f32.gmra.mrb[0].mxu0 %v631
        %v699 = vpop.f32.mrb[0].mxu0
        %v700 = vadd.f32 0.0, %v699
        %v701 = vpop.f32.mrb[0].mxu0
        %702 = vdwg.mxu0
        %v703 = vrcp.pop %v629
        %v704 = vmul.f32 1.0, %v703
        %v705 = vmul.f32 %v700, %v704
        %v706 = vmul.f32 %v705, %v705
        %707 = vadd.xlane.f32.xlu0 %v706
        %v708 = vpop.xlane.xlu0 %707
        %709 = vmatprep.subr.mxu0 0.0
        %710 = vmatpush1.msra.mxu0 %v271
        %711 = vmatprep.subr.mxu0 0.0
        %712 = vmatpush1.msra.mxu0 %v272
        %713 = vmatprep.subr.mxu0 0.0
        %714 = vmatpush1.msra.mxu0 %v273
        %715 = vmatprep.subr.mxu0 0.0
        %716 = vmatpush1.msra.mxu0 %v274
        %717 = vmatprep.subr.mxu0 0.0
        %718 = vmatpush1.msra.mxu0 %v275
        %719 = vmatprep.subr.mxu0 0.0
        %720 = vmatpush1.msra.mxu0 %v276
        %721 = vmatprep.subr.mxu0 0.0
        %722 = vmatpush1.msra.mxu0 %v277
        %723 = vmatprep.subr.mxu0 0.0
        %724 = vmatpush1.msra.mxu0 %v278
        %725 = vmatprep.subr.mxu0 0.0
        %726 = vmatpush1.msra.mxu0 %v279
        %727 = vmatprep.subr.mxu0 0.0
        %728 = vmatpush1.msra.mxu0 %v280
        %729 = vmatprep.subr.mxu0 0.0
        %730 = vmatpush1.msra.mxu0 %v281
        %731 = vmatprep.subr.mxu0 0.0
        %732 = vmatpush1.msra.mxu0 %v282
        %733 = vmatprep.subr.mxu0 0.0
        %734 = vmatpush1.msra.mxu0 %v283
        %735 = vmatprep.subr.mxu0 0.0
        %736 = vmatpush1.msra.mxu0 %v284
        %737 = vmatprep.subr.mxu0 0.0
        %738 = vmatpush1.msra.mxu0 %v285
        %739 = vmatprep.subr.mxu0 0.0
        %740 = vmatpush1.msra.mxu0 %v286
        %741 = vmatprep.subr.mxu0 0.0
        %742 = vmatpush1.msra.mxu0 0.0
        %743 = vmatprep.subr.mxu0 0.0
        %744 = vmatpush1.msra.mxu0 0.0
        %745 = vmatprep.subr.mxu0 0.0
        %746 = vmatpush1.msra.mxu0 0.0
        %747 = vmatprep.subr.mxu0 0.0
        %748 = vmatpush1.msra.mxu0 0.0
        %749 = vmatprep.subr.mxu0 0.0
        %750 = vmatpush1.msra.mxu0 0.0
        %751 = vmatprep.subr.mxu0 0.0
        %752 = vmatpush1.msra.mxu0 0.0
        %753 = vmatprep.subr.mxu0 0.0
        %754 = vmatpush1.msra.mxu0 0.0
        %755 = vmatprep.subr.mxu0 0.0
        %756 = vmatpush1.msra.mxu0 0.0
        %757 = vmatprep.subr.mxu0 0.0
        %758 = vmatpush1.msra.mxu0 0.0
        %759 = vmatprep.subr.mxu0 0.0
        %760 = vmatpush1.msra.mxu0 0.0
        %761 = vmatprep.subr.mxu0 0.0
        %762 = vmatpush1.msra.mxu0 0.0
        %763 = vmatprep.subr.mxu0 0.0
        %764 = vmatpush1.msra.mxu0 0.0
        %765 = vmatprep.subr.mxu0 0.0
        %766 = vmatpush1.msra.mxu0 0.0
        %767 = vmatprep.subr.mxu0 0.0
        %768 = vmatpush1.msra.mxu0 0.0
        %769 = vmatprep.subr.mxu0 0.0
        %770 = vmatpush1.msra.mxu0 0.0
        %771 = vmatprep.subr.mxu0 0.0
        %772 = vmatpush1.msra.mxu0 0.0
        %773 = vmatprep.mubr.f32.mxu0 0.0
        %774 = vmatmul.mubr.f32.gmra.mrb[0].mxu0 %v705
        %v775 = vpop.f32.mrb[0].mxu0
        %v776 = vadd.f32 0.0, %v775
        %v777 = vpop.f32.mrb[0].mxu0
        %778 = vdwg.mxu0
        %v779 = vadd.f32 %v708, %v439
        %v780 = vmul.f32 %v776, 2.0
        %v781 = vsub.f32 %v779, %v780
        %v782 = vmax.f32 %v781, 0.0
        %v783 = vrsqrt.pop %v782
        %v784 = vmul.f32 %v782, %v783
        %vm785 = vcmp.eq.f32.partialorder %v782, inf
        %v786 = vsel %vm785, %v782, %v784
        %vm787 = vcmp.eq.f32.partialorder %v782, 0.0
        %v788 = vand.u32 %v782, 2147483648
        %v789 = vsel %vm787, %v788, %v786
        %v790 = vadd.f32 %v789, 0.01
        %v791 = vrcp.pop %v790
        %v792 = vmul.f32 1.0, %v791
        %v793 = vmul.f32 %v792, %v269
        %v794 = vand.u32 2147483647, %v793
        %v795 = vsel %vm288, %v794, 0.0
        %796 = vadd.xlane.f32.xlu0 %v795
        %v797 = vpop.xlane.xlu0 %796
        %v798 = vmax.f32 %v797, 1e-12
        %v800 = vsel %vm288, %v793, 0
        %802 = vmatprep.subr.mxu0 0.0
        %803 = vmatpush1.msra.mxu0 %v270
        %804 = vmatprep.subr.mxu0 0.0
        %805 = vmatpush1.msra.mxu0 0.0
        %806 = vmatprep.subr.mxu0 0.0
        %807 = vmatpush1.msra.mxu0 0.0
        %808 = vmatprep.subr.mxu0 0.0
        %809 = vmatpush1.msra.mxu0 0.0
        %810 = vmatprep.subr.mxu0 0.0
        %811 = vmatpush1.msra.mxu0 0.0
        %812 = vmatprep.subr.mxu0 0.0
        %813 = vmatpush1.msra.mxu0 0.0
        %814 = vmatprep.subr.mxu0 0.0
        %815 = vmatpush1.msra.mxu0 0.0
        %816 = vmatprep.subr.mxu0 0.0
        %817 = vmatpush1.msra.mxu0 0.0
        %818 = vmatprep.subr.mxu0 0.0
        %819 = vmatpush1.msra.mxu0 0.0
        %820 = vmatprep.subr.mxu0 0.0
        %821 = vmatpush1.msra.mxu0 0.0
        %822 = vmatprep.subr.mxu0 0.0
        %823 = vmatpush1.msra.mxu0 0.0
        %824 = vmatprep.subr.mxu0 0.0
        %825 = vmatpush1.msra.mxu0 0.0
        %826 = vmatprep.subr.mxu0 0.0
        %827 = vmatpush1.msra.mxu0 0.0
        %828 = vmatprep.subr.mxu0 0.0
        %829 = vmatpush1.msra.mxu0 0.0
        %830 = vmatprep.subr.mxu0 0.0
        %831 = vmatpush1.msra.mxu0 0.0
        %832 = vmatprep.subr.mxu0 0.0
        %833 = vmatpush1.msra.mxu0 0.0
        %834 = vmatprep.subr.mxu0 0.0
        %835 = vmatpush1.msra.mxu0 0.0
        %836 = vmatprep.subr.mxu0 0.0
        %837 = vmatpush1.msra.mxu0 0.0
        %838 = vmatprep.subr.mxu0 0.0
        %839 = vmatpush1.msra.mxu0 0.0
        %840 = vmatprep.subr.mxu0 0.0
        %841 = vmatpush1.msra.mxu0 0.0
        %842 = vmatprep.subr.mxu0 0.0
        %843 = vmatpush1.msra.mxu0 0.0
        %844 = vmatprep.subr.mxu0 0.0
        %845 = vmatpush1.msra.mxu0 0.0
        %846 = vmatprep.subr.mxu0 0.0
        %847 = vmatpush1.msra.mxu0 0.0
        %848 = vmatprep.subr.mxu0 0.0
        %849 = vmatpush1.msra.mxu0 0.0
        %850 = vmatprep.subr.mxu0 0.0
        %851 = vmatpush1.msra.mxu0 0.0
        %852 = vmatprep.subr.mxu0 0.0
        %853 = vmatpush1.msra.mxu0 0.0
        %854 = vmatprep.subr.mxu0 0.0
        %855 = vmatpush1.msra.mxu0 0.0
        %856 = vmatprep.subr.mxu0 0.0
        %857 = vmatpush1.msra.mxu0 0.0
        %858 = vmatprep.subr.mxu0 0.0
        %859 = vmatpush1.msra.mxu0 0.0
        %860 = vmatprep.subr.mxu0 0.0
        %861 = vmatpush1.msra.mxu0 0.0
        %862 = vmatprep.subr.mxu0 0.0
        %863 = vmatpush1.msra.mxu0 0.0
        %864 = vmatprep.subr.mxu0 0.0
        %865 = vmatpush1.msra.mxu0 0.0
        %866 = vmatprep.mubr.f32.mxu0 0.0
        %867 = vmatmul.mubr.f32.gmra.mrb[0].mxu0 %v800
        %v868 = vpop.f32.mrb[0].mxu0
        %v869 = vadd.f32 0.0, %v868
        %v870 = vpop.f32.mrb[0].mxu0
        %871 = vdwg.mxu0
        %v872 = vrcp.pop %v798
        %v873 = vmul.f32 1.0, %v872
        %v874 = vmul.f32 %v869, %v873
        %875 = vst [vmem:[%s249] sm:$0xff] %v874
        %s876 = sand.u32 %s146, 1
        %s877 = scalar_lea.sflag [#allocation3], %s876
        %s878 = sand.u32 %s146, 1
        %s879 = smul.addr %s878, 8
        %s880 = scalar_lea.vmem [#allocation2], %s879
        // Predicated region
        $region37: #{tpu_custom_call.1} parent=35 // pred_check
          %p881 = pneg %p156
        $region38: #{tpu_custom_call.1} parent=35 // pred_check_branch
          %883 = sbr.rel (%p881) target = $region40
        $region39: #{tpu_custom_call.1} parent=35 // pred_region
          %s885 = ssub.s32 128, 128
          %886 = vsyncadd %s877, %s885
          %s887 = sadd.s32 %s23, %s22
          %s888 = smul.addr %s887, 128
          %s889 = scalar_lea.hbm %s4, %s888
          %s891 = sshll.u32 %s880, 4
          %s892 = int_to_ptr.vmem [resolvable:$true] %s891
          %894 = dma.vmem_to_hbm [thread:$0]  %s892, 128, %s889, %s877
        $region40: #{tpu_custom_call.1} parent=35 // pred_fallthru
          _
      $region36: #{tpu_custom_call.1} parent=5 // pred_fallthru
        _
      %p895 = scmp.le.s32.totalorder 2, %s13
      // Predicated region
      $region41: #{tpu_custom_call.1} parent=5 // pred_check
        %p896 = pneg %p895
      $region42: #{tpu_custom_call.1} parent=5 // pred_check_branch
        %898 = sbr.rel (%p896) target = $region44
      $region43: #{tpu_custom_call.1} parent=5 // pred_region
        %s899 = ssub.s32 %s13, 2
        // Predicated region
        $region45: #{tpu_custom_call.1} parent=43 // pred_check
          %p900 = pneg %p162
        $region46: #{tpu_custom_call.1} parent=43 // pred_check_branch
          %902 = sbr.rel (%p900) target = $region48
        $region47: #{tpu_custom_call.1} parent=43 // pred_region
          %s903 = sand.u32 %s147, 1
          %s904 = scalar_lea.sflag [#allocation3], %s903
          %s905 = sand.u32 %s147, 1
          %s906 = smul.addr %s905, 8
          %s907 = scalar_lea.vmem [#allocation2], %s906
          %908 = dma.done %s904, 128
        $region48: #{tpu_custom_call.1} parent=43 // pred_fallthru
          _
      $region44: #{tpu_custom_call.1} parent=5 // pred_fallthru
        _
    $region6: #{tpu_custom_call.1} parent=1 // loop_footer
      %s17 = sadd.s32 1, %s13
    $region7: #{tpu_custom_call.1} parent=1 // loop_footer_branch
      %12 = sbr.rel target = $region3
    $region8: #{tpu_custom_call.1} parent=1 // loop_exit
      _
    %909 = vsyncpa [#allocation3], 1
    %s910 = scalar_lea.sflag [#allocation3], 1
    %911 = vsyncpa %s910, 1

</llo_original>
